<compile_context>
chip_gen: v5e
topology: v5e:2x2
jax: 0.10.0
libtpu: 0.0.40
codegen_flags: <defaults>
</compile_context>

<pallas_src>
import functools
import math

import jax
import jax.numpy as jnp
from jax.experimental import pallas as pl
from jax.experimental.pallas import tpu as pltpu


def _linear_bn_kernel(x_ref, w_ref, g_ref, beta_ref, o_ref, acc_ref, *, eps, relu):
    """One (n, k) grid step of: Linear (no bias) -> BatchNorm1d (train stats) [-> ReLU].

    Grid = (N_tiles, K_tiles) with K (reduction) innermost: the f32 accumulator is
    zeroed at k == 0 and the BN + (ReLU) epilogue runs at the last k step.
    """
    k = pl.program_id(1)

    @pl.when(k == 0)
    def _():
        acc_ref[...] = jnp.zeros_like(acc_ref)

    # bf16 x bf16 -> f32 accumulation on the MXU.
    acc_ref[...] += jnp.dot(x_ref[...], w_ref[...],
                            preferred_element_type=jnp.float32)

    @pl.when(k == pl.num_programs(1) - 1)
    def _():
        y = acc_ref[...]
        # BatchNorm1d, training-mode batch statistics (biased variance), f32 math.
        # Linear bias intentionally elided: it cancels exactly in (y - mean).
        mean = jnp.mean(y, axis=0, keepdims=True)
        centered = y - mean                          # computed once, reused
        var = jnp.mean(centered * centered, axis=0, keepdims=True)
        inv = jax.lax.rsqrt(var + eps)               # EUP rsqrt (free vs VPU divide)
        scale = inv * g_ref[...]                     # folded per-feature scale
        out = centered * scale + beta_ref[...]
        if relu:
            out = jnp.maximum(out, 0.0)
        o_ref[...] = out.astype(o_ref.dtype)


def _pick_tile(dim, target):
    """Largest multiple of 128 <= target that divides dim (or the full dim if small)."""
    if dim <= target:
        return dim
    for t in range(target, 127, -128):
        if dim % t == 0:
            return t
    return dim


def _linear_bn(x, w, gamma, beta, *, relu, eps, out_dtype,
               tn_target=512, tk_target=512):
    """x: [B, K] (bf16), w: [K, N] (bf16, pre-transposed), gamma/beta: [1, N] (f32)."""
    B, K = x.shape
    Kw, N = w.shape
    assert K == Kw, (K, Kw)
    tk = _pick_tile(K, tk_target)
    tn = _pick_tile(N, tn_target)
    grid = (N // tn, K // tk)

    kernel = functools.partial(_linear_bn_kernel, eps=eps, relu=relu)

    out_itemsize = jnp.dtype(out_dtype).itemsize
    in_itemsize = x.dtype.itemsize
    # Rough per-core VMEM footprint (double-buffered tiles + f32 accumulator).
    tile_bytes = (2 * (B * tk + tk * tn) * in_itemsize
                  + 2 * (2 * tn) * 4
                  + 2 * B * tn * out_itemsize
                  + B * tn * 4)
    vmem_limit = int(min(max(4 * tile_bytes, 32 * 1024 * 1024), 48 * 1024 * 1024))

    cost = pl.CostEstimate(
        flops=2 * B * K * N,
        transcendentals=N,  # rsqrt per output feature
        bytes_accessed=int(x.size * in_itemsize + w.size * in_itemsize
                           + gamma.size * 4 + beta.size * 4 + B * N * out_itemsize),
    )

    return pl.pallas_call(
        kernel,
        out_shape=jax.ShapeDtypeStruct((B, N), out_dtype),
        grid_spec=pltpu.PrefetchScalarGridSpec(
            num_scalar_prefetch=0,
            grid=grid,
            in_specs=[
                pl.BlockSpec((B, tk), lambda n, k: (0, k)),    # activations
                pl.BlockSpec((tk, tn), lambda n, k: (k, n)),   # weights (streamed)
                pl.BlockSpec((1, tn), lambda n, k: (0, n)),    # BN gamma
                pl.BlockSpec((1, tn), lambda n, k: (0, n)),    # BN beta
            ],
            out_specs=pl.BlockSpec((B, tn), lambda n, k: (0, n)),
            scratch_shapes=[pltpu.VMEM((B, tn), jnp.float32)],
        ),
        compiler_params=pltpu.CompilerParams(
            dimension_semantics=("parallel", "arbitrary"),
            vmem_limit_bytes=vmem_limit,
        ),
        cost_estimate=cost,
    )(x, w, gamma, beta)


def projection_mlp_pallas(x, params, *, num_layers=3, eps=1e-5,
                          tn_target=512, tk_target=512):
    """Forward pass of projection_MLP.

    x: [B, in_dim] f32.
    params = (w1, g1, beta1, w2, g2, beta2, w3, g3, beta3)
      w*: [in, out]  (transposed vs. torch Linear.weight), any float dtype
      g*/beta*: [1, out]  BatchNorm affine parameters (f32).
    Linear biases are not taken: training-mode BatchNorm cancels them exactly.
    """
    (w1, g1, be1, w2, g2, be2, w3, g3, be3) = params
    if num_layers not in (2, 3):
        raise ValueError("num_layers must be 2 or 3")

    cd = jnp.bfloat16
    kw = dict(eps=eps, tn_target=tn_target, tk_target=tk_target)

    h = x.astype(cd)
    h = _linear_bn(h, w1.astype(cd), g1, be1, relu=True, out_dtype=cd, **kw)
    if num_layers == 3:
        h = _linear_bn(h, w2.astype(cd), g2, be2, relu=True, out_dtype=cd, **kw)
    # Output fc: BN but no ReLU; final output back in the input dtype (f32).
    return _linear_bn(h, w3.astype(cd), g3, be3, relu=False, out_dtype=x.dtype, **kw)


def projection_mlp_ref(x, params, biases, num_layers=3, eps=1e-5):
    """Pure-JAX reference (training-mode BatchNorm1d, biased variance), *with* the
    Linear bias, using the same bf16-matmul / f32-epilogue precision as the kernel."""
    (w1, g1, be1, w2, g2, be2, w3, g3, be3) = params
    (b1, b2, b3) = biases

    def layer(h, w, b, g, be, relu, last):
        y = jnp.dot(h.astype(jnp.bfloat16), w.astype(jnp.bfloat16),
                    preferred_element_type=jnp.float32) + b
        mean = y.mean(axis=0, keepdims=True)
        var = jnp.square(y - mean).mean(axis=0, keepdims=True)
        y = (y - mean) / jnp.sqrt(var + eps) * g + be
        if relu:
            y = jnp.maximum(y, 0.0)
        if not last:
            y = y.astype(jnp.bfloat16).astype(jnp.float32)
        return y

    h = layer(x, w1, b1, g1, be1, relu=True, last=False)
    if num_layers == 3:
        h = layer(h, w2, b2, g2, be2, relu=True, last=False)
    return layer(h, w3, b3, g3, be3, relu=False, last=True)


if __name__ == "__main__":
    # Small shapes consistent with the module (real model: hidden=2048, out=4096).
    # hidden/out are multiples of 128; small tile targets exercise both grid axes
    # (N tiling + K-reduction accumulator path) the way the real shapes would.
    B, in_dim, hidden_dim, out_dim = 8, 32, 256, 256
    tn_target, tk_target = 128, 128

    key = jax.random.PRNGKey(0)
    keys = jax.random.split(key, 16)

    x = jax.random.normal(keys[0], (B, in_dim), dtype=jnp.float32)

    def linear_init(kw_, kb_, fan_in, fan_out):
        bound = 1.0 / math.sqrt(fan_in)
        w_t = jax.random.uniform(kw_, (fan_in, fan_out), jnp.float32, -bound, bound)
        b = jax.random.uniform(kb_, (1, fan_out), jnp.float32, -bound, bound)
        return w_t, b

    w1, b1 = linear_init(keys[1], keys[2], in_dim, hidden_dim)
    w2, b2 = linear_init(keys[3], keys[4], hidden_dim, hidden_dim)
    w3, b3 = linear_init(keys[5], keys[6], hidden_dim, out_dim)

    # BatchNorm affine params (non-default so the BN path is actually exercised).
    g1 = 1.0 + 0.1 * jax.random.normal(keys[7], (1, hidden_dim), jnp.float32)
    be1 = 0.1 * jax.random.normal(keys[8], (1, hidden_dim), jnp.float32)
    g2 = 1.0 + 0.1 * jax.random.normal(keys[9], (1, hidden_dim), jnp.float32)
    be2 = 0.1 * jax.random.normal(keys[10], (1, hidden_dim), jnp.float32)
    g3 = 1.0 + 0.1 * jax.random.normal(keys[11], (1, out_dim), jnp.float32)
    be3 = 0.1 * jax.random.normal(keys[12], (1, out_dim), jnp.float32)

    params = (w1, g1, be1, w2, g2, be2, w3, g3, be3)
    biases = (b1, b2, b3)  # used only by the reference; BN cancels them exactly

    out = projection_mlp_pallas(x, params, num_layers=3,
                                tn_target=tn_target, tk_target=tk_target)
    out = jax.block_until_ready(out)

    ref = projection_mlp_ref(x, params, biases, num_layers=3)
    assert out.shape == (B, out_dim)
    assert out.dtype == x.dtype
    assert jnp.allclose(out, ref, atol=2e-2, rtol=2e-2), (
        "mismatch vs reference; max abs diff = %f" % float(jnp.max(jnp.abs(out - ref))))

    # Also exercise the 2-layer configuration (layer2 weights are never DMA'd).
    out2 = jax.block_until_ready(
        projection_mlp_pallas(x, params, num_layers=2,
                              tn_target=tn_target, tk_target=tk_target))
    ref2 = projection_mlp_ref(x, params, biases, num_layers=2)
    assert jnp.allclose(out2, ref2, atol=2e-2, rtol=2e-2), "mismatch (num_layers=2)"

    print("KERNEL_OK")
</pallas_src>

<mosaic_0001>
module attributes {stable_mosaic.version = 11 : i64} {
  func.func @_linear_bn_kernel(%arg0: i32, %arg1: i32, %arg2: memref<8x32xbf16, #tpu.memory_space<vmem>>, %arg3: memref<32x128xbf16, #tpu.memory_space<vmem>>, %arg4: memref<1x128xf32, #tpu.memory_space<vmem>>, %arg5: memref<1x128xf32, #tpu.memory_space<vmem>>, %arg6: memref<8x128xbf16, #tpu.memory_space<vmem>>, %arg7: memref<8x128xf32, #tpu.memory_space<vmem>>) attributes {dimension_semantics = [#tpu.dimension_semantics<parallel>, #tpu.dimension_semantics<arbitrary>], iteration_bounds = array<i64: 2, 1>, scalar_prefetch = 0 : i64, scratch_operands = 1 : i64, tpu.core_type = #tpu.core_type<tc>, window_params = [{transform_indices = @transform_0, window_bounds = array<i64: 8, 32>}, {transform_indices = @transform_1, window_bounds = array<i64: 32, 128>}, {transform_indices = @transform_2, window_bounds = array<i64: 1, 128>}, {transform_indices = @transform_3, window_bounds = array<i64: 1, 128>}, {transform_indices = @transform_4, window_bounds = array<i64: 8, 128>}]} {
    %c0_i32 = arith.constant 0 : i32
    %0 = arith.cmpi eq, %arg1, %c0_i32 : i32
    %1 = arith.extui %0 : i1 to i32
    %c0_i32_0 = arith.constant 0 : i32
    %2 = arith.cmpi ne, %1, %c0_i32_0 : i32
    scf.if %2 {
      %cst_10 = arith.constant 0.000000e+00 : f32
      %12 = vector.broadcast %cst_10 : f32 to vector<8x128xf32>
      %c0_11 = arith.constant 0 : index
      %c0_12 = arith.constant 0 : index
      %13 = vector.load %arg7[%c0_11, %c0_12] : memref<8x128xf32, #tpu.memory_space<vmem>>, vector<8x128xf32>
      tpu.vector_store %arg7[%c0_11, %c0_12], %12 {strides = array<i32>} : memref<8x128xf32, #tpu.memory_space<vmem>>, vector<8x128xf32>,
    } else {
    }
    %c0 = arith.constant 0 : index
    %c0_1 = arith.constant 0 : index
    %3 = vector.load %arg7[%c0, %c0_1] : memref<8x128xf32, #tpu.memory_space<vmem>>, vector<8x128xf32>
    %c0_2 = arith.constant 0 : index
    %c0_3 = arith.constant 0 : index
    %4 = vector.load %arg2[%c0_2, %c0_3] : memref<8x32xbf16, #tpu.memory_space<vmem>>, vector<8x32xbf16>
    %c0_4 = arith.constant 0 : index
    %c0_5 = arith.constant 0 : index
    %5 = vector.load %arg3[%c0_4, %c0_5] : memref<32x128xbf16, #tpu.memory_space<vmem>>, vector<32x128xbf16>
    %cst = arith.constant dense<0.000000e+00> : vector<8x128xf32>
    %6 = tpu.matmul %4, %5, %cst {dimension_numbers = #tpu.dot_dimension_numbers<[1], [0], [0], [1], [0, 0, 1, 1], [], []>} : vector<8x32xbf16>, vector<32x128xbf16>, vector<8x128xf32> -> vector<8x128xf32>
    %7 = arith.addf %3, %6 : vector<8x128xf32>
    %c0_6 = arith.constant 0 : index
    %c0_7 = arith.constant 0 : index
    %8 = vector.load %arg7[%c0_6, %c0_7] : memref<8x128xf32, #tpu.memory_space<vmem>>, vector<8x128xf32>
    tpu.vector_store %arg7[%c0_6, %c0_7], %7 {strides = array<i32>} : memref<8x128xf32, #tpu.memory_space<vmem>>, vector<8x128xf32>,
    %c0_i32_8 = arith.constant 0 : i32
    %9 = arith.cmpi eq, %arg1, %c0_i32_8 : i32
    %10 = arith.extui %9 : i1 to i32
    %c0_i32_9 = arith.constant 0 : i32
    %11 = arith.cmpi ne, %10, %c0_i32_9 : i32
    scf.if %11 {
      %c0_10 = arith.constant 0 : index
      %c0_11 = arith.constant 0 : index
      %12 = vector.load %arg7[%c0_10, %c0_11] : memref<8x128xf32, #tpu.memory_space<vmem>>, vector<8x128xf32>
      %cst_12 = arith.constant dense<0.000000e+00> : vector<128xf32>
      %13 = vector.multi_reduction <add>, %12, %cst_12 [0] : vector<8x128xf32> to vector<128xf32>
      %14 = vector.shape_cast %13 : vector<128xf32> to vector<1x128xf32>
      %cst_13 = arith.constant 8.000000e+00 : f32
      %15 = vector.broadcast %cst_13 : f32 to vector<1x128xf32>
      %16 = arith.divf %14, %15 : vector<1x128xf32>
      %17 = vector.broadcast %16 : vector<1x128xf32> to vector<8x128xf32>
      %18 = arith.subf %12, %17 : vector<8x128xf32>
      %19 = arith.mulf %18, %18 : vector<8x128xf32>
      %cst_14 = arith.constant dense<0.000000e+00> : vector<128xf32>
      %20 = vector.multi_reduction <add>, %19, %cst_14 [0] : vector<8x128xf32> to vector<128xf32>
      %21 = vector.shape_cast %20 : vector<128xf32> to vector<1x128xf32>
      %cst_15 = arith.constant 8.000000e+00 : f32
      %22 = vector.broadcast %cst_15 : f32 to vector<1x128xf32>
      %23 = arith.divf %21, %22 : vector<1x128xf32>
      %cst_16 = arith.constant 9.99999974E-6 : f32
      %24 = vector.broadcast %cst_16 : f32 to vector<1x128xf32>
      %25 = arith.addf %23, %24 : vector<1x128xf32>
      %26 = math.rsqrt %25 : vector<1x128xf32>
      %c0_17 = arith.constant 0 : index
      %c0_18 = arith.constant 0 : index
      %27 = vector.load %arg4[%c0_17, %c0_18] : memref<1x128xf32, #tpu.memory_space<vmem>>, vector<1x128xf32>
      %28 = arith.mulf %26, %27 : vector<1x128xf32>
      %29 = vector.broadcast %28 : vector<1x128xf32> to vector<8x128xf32>
      %30 = arith.mulf %18, %29 : vector<8x128xf32>
      %c0_19 = arith.constant 0 : index
      %c0_20 = arith.constant 0 : index
      %31 = vector.load %arg5[%c0_19, %c0_20] : memref<1x128xf32, #tpu.memory_space<vmem>>, vector<1x128xf32>
      %32 = vector.broadcast %31 : vector<1x128xf32> to vector<8x128xf32>
      %33 = arith.addf %30, %32 : vector<8x128xf32>
      %cst_21 = arith.constant 0.000000e+00 : f32
      %34 = vector.broadcast %cst_21 : f32 to vector<8x128xf32>
      %35 = arith.maximumf %33, %34 : vector<8x128xf32>
      %36 = arith.truncf %35 : vector<8x128xf32> to vector<8x128xbf16>
      %c0_22 = arith.constant 0 : index
      %c0_23 = arith.constant 0 : index
      %37 = vector.load %arg6[%c0_22, %c0_23] : memref<8x128xbf16, #tpu.memory_space<vmem>>, vector<8x128xbf16>
      tpu.vector_store %arg6[%c0_22, %c0_23], %36 {strides = array<i32>} : memref<8x128xbf16, #tpu.memory_space<vmem>>, vector<8x128xbf16>,
    } else {
    }
    return
  }
  func.func @transform_0(%arg0: i32, %arg1: i32) -> (i32, i32) {
    %c0_i32 = arith.constant 0 : i32
    %c0_i32_0 = arith.constant 0 : i32
    return %c0_i32, %arg1 : i32, i32
  }
  func.func @transform_1(%arg0: i32, %arg1: i32) -> (i32, i32) {
    %c0_i32 = arith.constant 0 : i32
    return %arg1, %arg0 : i32, i32
  }
  func.func @transform_2(%arg0: i32, %arg1: i32) -> (i32, i32) {
    %c0_i32 = arith.constant 0 : i32
    %c0_i32_0 = arith.constant 0 : i32
    return %c0_i32, %arg0 : i32, i32
  }
  func.func @transform_3(%arg0: i32, %arg1: i32) -> (i32, i32) {
    %c0_i32 = arith.constant 0 : i32
    %c0_i32_0 = arith.constant 0 : i32
    return %c0_i32, %arg0 : i32, i32
  }
  func.func @transform_4(%arg0: i32, %arg1: i32) -> (i32, i32) {
    %c0_i32 = arith.constant 0 : i32
    %c0_i32_0 = arith.constant 0 : i32
    return %c0_i32, %arg0 : i32, i32
  }
}

</mosaic_0001>

<llo_original>
// kernel: tpu_custom_call.1
$region0: #{tpu_custom_call.1}
  #allocation0 [shape = 'u32[]', space=smem, size = 0x4, offset = 0x4, fixed_abs, tag = 'smem constant byte address 0x4 - core index']
  #allocation1 [shape = 'u32[72,128]{1,0:T(1,128)}', space=vmem, size = 0x9000, scoped, tag = 'internal scratch']
  #allocation2 [shape = 'f32[8,128]{1,0:T(8,128)}', space=vmem, size = 0x1000, scoped, tag = 'scratch operand']
  %s0 = inlined_call_operand.hbm [shape: bf16[8,32], index: 0, kind: input, shape index: {}]
  %s1 = inlined_call_operand.hbm [shape: bf16[32,256], index: 1, kind: input, shape index: {}]
  %s2 = inlined_call_operand.hbm [shape: f32[1,256], index: 2, kind: input, shape index: {}]
  %s3 = inlined_call_operand.vmem [shape: f32[1,256], index: 3, kind: input, shape index: {}]
  %s4 = inlined_call_operand.hbm [shape: bf16[8,256], index: 4, kind: output, shape index: {}]
  %s5 = sld [smem:[#allocation0]]
  $region69: #{tpu_custom_call.1} parent=0
    _
  %s7 = ssub.s32 1, %s5
  %s8 = scalar_select 0, %s7, %s5
  $region1: #{tpu_custom_call.1} parent=0
    #allocation3 [shape = 'u8[2048]{0}', space=vmem, size = 0x800, scoped, tag = 'input window, operand 0, single buffered']
    #allocation4 [shape = 's32[2]{0}', space=sflag, size = 0x8, scoped, tag = 'scoped memory for tpu_custom_call.1']
    #allocation5 [shape = 's32[2]{0}', space=sflag, size = 0x8, scoped, tag = 'scoped memory for tpu_custom_call.1']
    #allocation6 [shape = 'u8[16384]{0}', space=vmem, size = 0x4000, scoped, tag = 'input window, operand 1']
    #allocation7 [shape = 's32[2]{0}', space=sflag, size = 0x8, scoped, tag = 'scoped memory for tpu_custom_call.1']
    #allocation8 [shape = 'u8[1024]{0}', space=vmem, size = 0x400, scoped, tag = 'input window, operand 2']
    #allocation9 [shape = 'u8[4096]{0}', space=vmem, size = 0x1000, scoped, tag = 'output window, operand 0']
    %9 = vsyncpa [#allocation4], 0
    %10 = vsyncpa [#allocation7], 0
    %s11 = scalar_lea.sflag [#allocation7], 1
    %12 = vsyncpa %s11, 0
    %13 = vsyncpa [#allocation5], 0
    %s14 = scalar_lea.sflag [#allocation5], 1
    %15 = vsyncpa %s14, 0
    loop: start=0, step=1, limit=4
    $region2: #{tpu_custom_call.1} parent=1 // loop_pre_header
      _
    $region3: #{tpu_custom_call.1} parent=1 // loop_header
      %s17 = sphi 0, %s21
      %p18 = scmp.ge.s32.totalorder %s17, 4
      %s24 = sphi 0, %s36
      %s25 = sphi 0, %s32
      %s26 = sphi 0, %s24
      %s27 = sphi 0, %s25
      %s28 = sphi 0, %s26
      %s29 = sphi 0, %s27
      %s39 = sphi 0, %s41
      %s42 = sphi 0, %s39
      %s43 = sphi 0, %s42
      %s59 = sphi 0, %s43
      %s67 = sphi 0, %s69
      %s70 = sphi 0, %s67
      %s71 = sphi 0, %s70
      %s87 = sphi 0, %s71
      %s93 = sphi 0, %s95
      %s96 = sphi 0, %s93
      %s97 = sphi 0, %s96
      %s113 = sphi 0, %s97
      %s119 = sphi 0, %s121
      %s122 = sphi 0, %s119
      %s123 = sphi 0, %s122
      %s139 = sphi 0, %s123
      %s145 = sphi 0, %s147
      %s148 = sphi 0, %s145
      %s149 = sphi 0, %s148
      %s165 = sphi 0, %s149
    $region4: #{tpu_custom_call.1} parent=1 // loop_header_branch
      %20 = sbr.rel (%p18) target = $region8
    $region5: #{tpu_custom_call.1} parent=1 // loop_body
      %s22 = ssub.s32 %s17, 1
      %s23 = ssub.s32 %s17, 2
      %s30 = sadd.s32 1, %s25
      %p31 = scmp.ge.s32.totalorder %s30, 1
      %s32 = scalar_select %p31, 0, %s30
      %s33 = sadd.s32 1, %s24
      %s34 = scalar_select %p31, %s33, %s24
      %p35 = scmp.ge.s32.totalorder %s34, 2
      %s36 = scalar_select %p35, 0, %s34
      %s37 = ssub.s32 %s25, %s32
      %p38 = scmp.eq.s32.totalorder %s37, 0
      %s40 = sadd.s32 %s39, 1
      %s41 = scalar_select %p38, %s39, %s40
      %p44 = pneg %p38
      %p45 = scmp.eq.s32.totalorder %s17, 1
      %p46 = por %p44, %p45
      %p47 = scmp.ne.s32.totalorder %s39, %s42
      %p48 = scmp.eq.s32.totalorder %s17, 0
      %p49 = por %p47, %p48
      %p50 = scmp.ne.s32.totalorder %s39, %s42
      %p51 = scmp.eq.s32.totalorder %s22, 1
      %p52 = por %p50, %p51
      %p53 = scmp.ne.s32.totalorder %s42, %s43
      %p54 = scmp.eq.s32.totalorder %s22, 0
      %p55 = por %p53, %p54
      %p56 = scmp.ne.s32.totalorder %s42, %s43
      %p57 = scmp.eq.s32.totalorder %s23, 1
      %p58 = por %p56, %p57
      %p60 = scmp.ne.s32.totalorder %s43, %s59
      %p61 = scmp.eq.s32.totalorder %s23, 0
      %p62 = por %p60, %p61
      %s63 = ssub.s32 %s25, %s32
      %s64 = ssub.s32 %s24, %s36
      %s65 = sor.u32 %s63, %s64
      %p66 = scmp.eq.s32.totalorder %s65, 0
      %s68 = sadd.s32 %s67, 1
      %s69 = scalar_select %p66, %s67, %s68
      %p72 = pneg %p66
      %p73 = scmp.eq.s32.totalorder %s17, 1
      %p74 = por %p72, %p73
      %p75 = scmp.ne.s32.totalorder %s67, %s70
      %p76 = scmp.eq.s32.totalorder %s17, 0
      %p77 = por %p75, %p76
      %p78 = scmp.ne.s32.totalorder %s67, %s70
      %p79 = scmp.eq.s32.totalorder %s22, 1
      %p80 = por %p78, %p79
      %p81 = scmp.ne.s32.totalorder %s70, %s71
      %p82 = scmp.eq.s32.totalorder %s22, 0
      %p83 = por %p81, %p82
      %p84 = scmp.ne.s32.totalorder %s70, %s71
      %p85 = scmp.eq.s32.totalorder %s23, 1
      %p86 = por %p84, %p85
      %p88 = scmp.ne.s32.totalorder %s71, %s87
      %p89 = scmp.eq.s32.totalorder %s23, 0
      %p90 = por %p88, %p89
      %s91 = ssub.s32 %s24, %s36
      %p92 = scmp.eq.s32.totalorder %s91, 0
      %s94 = sadd.s32 %s93, 1
      %s95 = scalar_select %p92, %s93, %s94
      %p98 = pneg %p92
      %p99 = scmp.eq.s32.totalorder %s17, 1
      %p100 = por %p98, %p99
      %p101 = scmp.ne.s32.totalorder %s93, %s96
      %p102 = scmp.eq.s32.totalorder %s17, 0
      %p103 = por %p101, %p102
      %p104 = scmp.ne.s32.totalorder %s93, %s96
      %p105 = scmp.eq.s32.totalorder %s22, 1
      %p106 = por %p104, %p105
      %p107 = scmp.ne.s32.totalorder %s96, %s97
      %p108 = scmp.eq.s32.totalorder %s22, 0
      %p109 = por %p107, %p108
      %p110 = scmp.ne.s32.totalorder %s96, %s97
      %p111 = scmp.eq.s32.totalorder %s23, 1
      %p112 = por %p110, %p111
      %p114 = scmp.ne.s32.totalorder %s97, %s113
      %p115 = scmp.eq.s32.totalorder %s23, 0
      %p116 = por %p114, %p115
      %s117 = ssub.s32 %s24, %s36
      %p118 = scmp.eq.s32.totalorder %s117, 0
      %s120 = sadd.s32 %s119, 1
      %s121 = scalar_select %p118, %s119, %s120
      %p124 = pneg %p118
      %p125 = scmp.eq.s32.totalorder %s17, 1
      %p126 = por %p124, %p125
      %p127 = scmp.ne.s32.totalorder %s119, %s122
      %p128 = scmp.eq.s32.totalorder %s17, 0
      %p129 = por %p127, %p128
      %p130 = scmp.ne.s32.totalorder %s119, %s122
      %p131 = scmp.eq.s32.totalorder %s22, 1
      %p132 = por %p130, %p131
      %p133 = scmp.ne.s32.totalorder %s122, %s123
      %p134 = scmp.eq.s32.totalorder %s22, 0
      %p135 = por %p133, %p134
      %p136 = scmp.ne.s32.totalorder %s122, %s123
      %p137 = scmp.eq.s32.totalorder %s23, 1
      %p138 = por %p136, %p137
      %p140 = scmp.ne.s32.totalorder %s123, %s139
      %p141 = scmp.eq.s32.totalorder %s23, 0
      %p142 = por %p140, %p141
      %s143 = ssub.s32 %s24, %s36
      %p144 = scmp.eq.s32.totalorder %s143, 0
      %s146 = sadd.s32 %s145, 1
      %s147 = scalar_select %p144, %s145, %s146
      %p150 = pneg %p144
      %p151 = scmp.eq.s32.totalorder %s17, 1
      %p152 = por %p150, %p151
      %p153 = scmp.ne.s32.totalorder %s145, %s148
      %p154 = scmp.eq.s32.totalorder %s17, 0
      %p155 = por %p153, %p154
      %p156 = scmp.ne.s32.totalorder %s145, %s148
      %p157 = scmp.eq.s32.totalorder %s22, 1
      %p158 = por %p156, %p157
      %p159 = scmp.ne.s32.totalorder %s148, %s149
      %p160 = scmp.eq.s32.totalorder %s22, 0
      %p161 = por %p159, %p160
      %p162 = scmp.ne.s32.totalorder %s148, %s149
      %p163 = scmp.eq.s32.totalorder %s23, 1
      %p164 = por %p162, %p163
      %p166 = scmp.ne.s32.totalorder %s149, %s165
      %p167 = scmp.eq.s32.totalorder %s23, 0
      %p168 = por %p166, %p167
      %p169 = scmp.le.s32.totalorder 1, %s17
      %p170 = scmp.lt.s32.totalorder %s17, 3
      %p171 = pnand %p169, %p170
      %p172 = pneg %p171
      // Predicated region
      $region9: #{tpu_custom_call.1} parent=5 // pred_check
        _
      $region10: #{tpu_custom_call.1} parent=5 // pred_check_branch
        %174 = sbr.rel (%p171) target = $region12
      $region11: #{tpu_custom_call.1} parent=5 // pred_region
        %s175 = ssub.s32 %s17, 1
        // Predicated region
        $region13: #{tpu_custom_call.1} parent=11 // pred_check
          %p176 = pneg %p55
        $region14: #{tpu_custom_call.1} parent=11 // pred_check_branch
          %178 = sbr.rel (%p176) target = $region16
        $region15: #{tpu_custom_call.1} parent=11 // pred_region
          %180 = vsyncadd [#allocation4], 0
          %s181 = smul.addr %s27, 4
          %s182 = scalar_lea.hbm %s0, %s181
          %s184 = sshll.u32 %s182, 4
          %s185 = int_to_ptr.hbm [resolvable:$true] %s184
          %s186 = sshll.u32 [#allocation3], 4
          %s187 = int_to_ptr.vmem [resolvable:$true] %s186
          %189 = dma.hbm_to_vmem [thread:$0]  %s185, 64, %s187, [#allocation4]
        $region16: #{tpu_custom_call.1} parent=11 // pred_fallthru
          _
      $region12: #{tpu_custom_call.1} parent=5 // pred_fallthru
        _
      %p190 = scmp.lt.s32.totalorder %s17, 2
      // Predicated region
      $region17: #{tpu_custom_call.1} parent=5 // pred_check
        %p191 = pneg %p190
      $region18: #{tpu_custom_call.1} parent=5 // pred_check_branch
        %193 = sbr.rel (%p191) target = $region20
      $region19: #{tpu_custom_call.1} parent=5 // pred_region
        // Predicated region
        $region21: #{tpu_custom_call.1} parent=19 // pred_check
          %p194 = pneg %p77
        $region22: #{tpu_custom_call.1} parent=19 // pred_check_branch
          %196 = sbr.rel (%p194) target = $region24
        $region23: #{tpu_custom_call.1} parent=19 // pred_region
          %s197 = sand.u32 %s17, 1
          %s198 = scalar_lea.sflag [#allocation7], %s197
          %s199 = sand.u32 %s67, 1
          %s200 = smul.addr %s199, 16
          %s201 = scalar_lea.vmem [#allocation6], %s200
          %s202 = smul.u32 4, %s25
          %204 = vsyncadd %s198, 0
          %s205 = smul.addr %s202, 2
          %s206 = sadd.s32 %s24, %s205
          %s207 = smul.addr %s206, 4
          %s208 = scalar_lea.hbm %s1, %s207
          %s209 = sshll.u32 %s208, 4
          %s210 = int_to_ptr.hbm [resolvable:$true] %s209
          %s211 = sshll.u32 %s201, 4
          %s212 = int_to_ptr.vmem [resolvable:$true] %s211
          %217 = dma.hbm_to_vmem [thread:$0]  %s210, 256, %s212, %s198, 128, 64, 4
        $region24: #{tpu_custom_call.1} parent=19 // pred_fallthru
          _
        // Predicated region
        $region25: #{tpu_custom_call.1} parent=19 // pred_check
          %p218 = pneg %p103
        $region26: #{tpu_custom_call.1} parent=19 // pred_check_branch
          %220 = sbr.rel (%p218) target = $region28
        $region27: #{tpu_custom_call.1} parent=19 // pred_region
          %s221 = sand.u32 %s17, 1
          %s222 = scalar_lea.sflag [#allocation7], %s221
          %s223 = sand.u32 %s93, 1
          %s224 = scalar_lea.vmem [#allocation8], %s223
          %226 = vsyncadd %s222, 0
          %s227 = scalar_lea.hbm %s2, %s24
          %s229 = sshll.u32 %s227, 4
          %s230 = int_to_ptr.hbm [resolvable:$true] %s229
          %s231 = sshll.u32 %s224, 4
          %s232 = int_to_ptr.vmem [resolvable:$true] %s231
          %234 = dma.hbm_to_vmem [thread:$0]  %s230, 16, %s232, %s222
        $region28: #{tpu_custom_call.1} parent=19 // pred_fallthru
          _
        // Predicated region
        $region29: #{tpu_custom_call.1} parent=19 // pred_check
          %p235 = pneg %p129
        $region30: #{tpu_custom_call.1} parent=19 // pred_check_branch
          %237 = sbr.rel (%p235) target = $region32
        $region31: #{tpu_custom_call.1} parent=19 // pred_region
          %p238 = scmp.lt.s32.totalorder %s24, 1
          %s239 = scalar_select %p238, %s24, 1
          %s240 = scalar_lea.vmem %s3, %s239
        $region32: #{tpu_custom_call.1} parent=19 // pred_fallthru
          _
      $region20: #{tpu_custom_call.1} parent=5 // pred_fallthru
        _
      %p241 = scmp.le.s32.totalorder 1, %s17
      %p242 = scmp.lt.s32.totalorder %s17, 3
      %p243 = pnand %p241, %p242
      %p244 = pneg %p243
      // Predicated region
      $region33: #{tpu_custom_call.1} parent=5 // pred_check
        _
      $region34: #{tpu_custom_call.1} parent=5 // pred_check_branch
        %246 = sbr.rel (%p243) target = $region36
      $region35: #{tpu_custom_call.1} parent=5 // pred_region
        %s247 = ssub.s32 %s17, 1
        // Predicated region
        $region37: #{tpu_custom_call.1} parent=35 // pred_check
          %p248 = pneg %p55
        $region38: #{tpu_custom_call.1} parent=35 // pred_check_branch
          %250 = sbr.rel (%p248) target = $region40
        $region39: #{tpu_custom_call.1} parent=35 // pred_region
          %252 = dma.done [#allocation4], 64
        $region40: #{tpu_custom_call.1} parent=35 // pred_fallthru
          _
        %s253 = sand.u32 %s22, 1
        %s254 = scalar_lea.sflag [#allocation7], %s253
        %s255 = sand.u32 %s70, 1
        %s256 = smul.addr %s255, 16
        %s257 = scalar_lea.vmem [#allocation6], %s256
        // Predicated region
        $region41: #{tpu_custom_call.1} parent=35 // pred_check
          %p258 = pneg %p83
        $region42: #{tpu_custom_call.1} parent=35 // pred_check_branch
          %260 = sbr.rel (%p258) target = $region44
        $region43: #{tpu_custom_call.1} parent=35 // pred_region
          %262 = dma.done %s254, 256
        $region44: #{tpu_custom_call.1} parent=35 // pred_fallthru
          _
        %s263 = sand.u32 %s22, 1
        %s264 = scalar_lea.sflag [#allocation7], %s263
        %s265 = sand.u32 %s96, 1
        %s266 = scalar_lea.vmem [#allocation8], %s265
        // Predicated region
        $region45: #{tpu_custom_call.1} parent=35 // pred_check
          %p267 = pneg %p109
        $region46: #{tpu_custom_call.1} parent=35 // pred_check_branch
          %269 = sbr.rel (%p267) target = $region48
        $region47: #{tpu_custom_call.1} parent=35 // pred_region
          %271 = dma.done %s264, 16
        $region48: #{tpu_custom_call.1} parent=35 // pred_fallthru
          _
        %p272 = pneg %p55
        %p273 = pneg %p52
        %s274 = sand.u32 %s22, 1
        %s275 = scalar_lea.sflag [#allocation7], %s274
        %s276 = sand.u32 %s70, 1
        %s277 = smul.addr %s276, 16
        %s278 = scalar_lea.vmem [#allocation6], %s277
        %p279 = pneg %p83
        %p280 = pneg %p80
        %s281 = sand.u32 %s22, 1
        %s282 = scalar_lea.sflag [#allocation7], %s281
        %s283 = sand.u32 %s96, 1
        %s284 = scalar_lea.vmem [#allocation8], %s283
        %p285 = pneg %p109
        %p286 = pneg %p106
        %p287 = scmp.lt.s32.totalorder %s26, 1
        %s288 = scalar_select %p287, %s26, 1
        %s289 = scalar_lea.vmem %s3, %s288
        %p290 = pneg %p135
        %p291 = pneg %p132
        %p292 = pneg %p161
        %p293 = pneg %p158
        %s294 = sand.u32 %s148, 1
        %s295 = scalar_lea.sflag [#allocation5], %s294
        %s296 = sand.u32 %s148, 1
        %s297 = smul.addr %s296, 4
        %s298 = scalar_lea.vmem [#allocation9], %s297
        %s299 = smul.u32 4, %s27
        %p300 = scmp.lt.s32.totalorder %s26, 1
        %s301 = scalar_select %p300, %s26, 1
        %s302 = scalar_lea.vmem %s3, %s301
        %p304 = scmp.eq.s32.totalorder %s27, 0
        // Predicated region
        $region49: #{tpu_custom_call.1} parent=35 // pred_check
          %p305 = pneg %p304
        $region50: #{tpu_custom_call.1} parent=35 // pred_check_branch
          %307 = sbr.rel (%p305) target = $region52
        $region51: #{tpu_custom_call.1} parent=35 // pred_region
          %308 = vst [vmem:[#allocation2] sm:$0xff] 0.0
        $region52: #{tpu_custom_call.1} parent=35 // pred_fallthru
          _
        %v309 = vld [vmem:[#allocation2] sm:$0xff]
        %v310 = vld [vmem:[#allocation3] sm:$0xf]
        %v311 = vld [vmem:[%s257] sm:$0xf]
        %v312 = vld [vmem:[%s257 + $0x4] sm:$0xf]
        %v313 = vld [vmem:[%s257 + $0x8] sm:$0xf]
        %v314 = vld [vmem:[%s257 + $0xc] sm:$0xf]
        %v319 = vunpack.c.l.b16 %v311
        %v320 = vunpack.c.l.b16 %v312
        %v321 = vunpack.c.l.b16 %v313
        %v322 = vunpack.c.l.b16 %v314
        %v323 = vpack.c.b16 %v320, %v319
        %v324 = vpack.c.b16 %v322, %v321
        %vm327 = vcmask 261120
        %v329 = vsel %vm327, %v310, 0
        %331 = vmatpush.bf16.msra.mxu0 0
        %332 = vmatpush.bf16.msra.mxu0 0
        %333 = vmatpush.bf16.msra.mxu0 0
        %334 = vmatpush.bf16.msra.mxu0 0
        %335 = vmatpush.bf16.msra.mxu0 0
        %336 = vmatpush.bf16.msra.mxu0 0
        %337 = vmatpush.bf16.msra.mxu0 %v324
        %338 = vmatpush.bf16.msra.mxu0 %v323
        %339 = vmatmul.bf16.gmra.mxu0 %v329
        %v340 = vpop.f32.mrf.mxu0
        %v341 = vadd.f32 0.0, %v340
        %v342 = vpop.f32.mrf.mxu0
        %343 = vdwg.mxu0
        %v344 = vadd.f32 %v309, %v341
        %345 = vst [vmem:[#allocation2] sm:$0xff] %v344
        // Predicated region
        $region53: #{tpu_custom_call.1} parent=35 // pred_check
          %p346 = pneg %p304
        $region54: #{tpu_custom_call.1} parent=35 // pred_check_branch
          %348 = sbr.rel (%p346) target = $region56
        $region55: #{tpu_custom_call.1} parent=35 // pred_region
          %v349 = vld [vmem:[#allocation2] sm:$0xff]
          %v350 = vrot.slane %v349, 4
          %v351 = vadd.f32 %v349, %v350
          %v352 = vrot.slane %v351, 2
          %v353 = vadd.f32 %v351, %v352
          %v354 = vrot.slane %v353, 1
          %v355 = vadd.f32 %v353, %v354
          %v356 = vrcp.pop 8.0
          %v357 = vmul.f32 8.0, %v356
          %v358 = vsub.f32 1.0, %v357
          %v359 = vmul.f32 %v356, %v358
          %v360 = vadd.f32 %v356, %v359
          %vm361 = vweird.f32 %v356
          %v362 = vsel %vm361, %v356, %v360
          %v363 = vmul.f32 %v355, %v362
          %v364 = vsub.f32 %v349, %v363
          %v365 = vmul.f32 %v364, %v364
          %v366 = vrot.slane %v365, 4
          %v367 = vadd.f32 %v365, %v366
          %v368 = vrot.slane %v367, 2
          %v369 = vadd.f32 %v367, %v368
          %v370 = vrot.slane %v369, 1
          %v371 = vadd.f32 %v369, %v370
          %v372 = vmul.f32 %v371, %v362
          %v373 = vadd.f32 %v372, 1e-05
          %v374 = vrsqrt.pop %v373
          %v375 = vmul.f32 %v374, %v373
          %v376 = vmul.f32 %v375, %v374
          %v377 = vmul.f32 0.5, %v376
          %v378 = vsub.f32 1.5, %v377
          %v379 = vmul.f32 %v374, %v378
          %vm380 = vweird.f32 %v373
          %vm381 = vweird.f32 %v374
          %vm382 = vmor %vm380, %vm381
          %v383 = vsel %vm382, %v374, %v379
          %v384 = vld [vmem:[%s266] sm:$0x1]
          %v385 = vmul.f32 %v383, %v384
          %v386 = vperm.slane %v385, 0
          %v387 = vmul.f32 %v364, %v386
          %v388 = vld [vmem:[%s302] sm:$0x1]
          %v390 = vperm.slane %v388, 0
          %v392 = vadd.f32 %v387, %v390
          %v393 = vmax.f32 %v392, 0.0
          %v394 = vpack.c.bf16 %v393, %v393
          %395 = vst [vmem:[%s298] sm:$0xf] %v394
        $region56: #{tpu_custom_call.1} parent=35 // pred_fallthru
          _
        %s396 = sand.u32 %s148, 1
        %s397 = scalar_lea.sflag [#allocation5], %s396
        %s398 = sand.u32 %s148, 1
        %s399 = smul.addr %s398, 4
        %s400 = scalar_lea.vmem [#allocation9], %s399
        // Predicated region
        $region57: #{tpu_custom_call.1} parent=35 // pred_check
          %p401 = pneg %p158
        $region58: #{tpu_custom_call.1} parent=35 // pred_check_branch
          %403 = sbr.rel (%p401) target = $region60
        $region59: #{tpu_custom_call.1} parent=35 // pred_region
          %405 = vsyncadd %s397, 0
          %s406 = smul.addr %s26, 4
          %s407 = scalar_lea.hbm %s4, %s406
          %s409 = sshll.u32 %s400, 4
          %s410 = int_to_ptr.vmem [resolvable:$true] %s409
          %s411 = sshll.u32 %s407, 4
          %s412 = int_to_ptr.hbm [resolvable:$true] %s411
          %414 = dma.vmem_to_hbm [thread:$0]  %s410, 64, %s412, %s397
        $region60: #{tpu_custom_call.1} parent=35 // pred_fallthru
          _
      $region36: #{tpu_custom_call.1} parent=5 // pred_fallthru
        _
      %p415 = scmp.le.s32.totalorder 2, %s17
      // Predicated region
      $region61: #{tpu_custom_call.1} parent=5 // pred_check
        %p416 = pneg %p415
      $region62: #{tpu_custom_call.1} parent=5 // pred_check_branch
        %418 = sbr.rel (%p416) target = $region64
      $region63: #{tpu_custom_call.1} parent=5 // pred_region
        %s419 = ssub.s32 %s17, 2
        // Predicated region
        $region65: #{tpu_custom_call.1} parent=63 // pred_check
          %p420 = pneg %p164
        $region66: #{tpu_custom_call.1} parent=63 // pred_check_branch
          %422 = sbr.rel (%p420) target = $region68
        $region67: #{tpu_custom_call.1} parent=63 // pred_region
          %s423 = sand.u32 %s149, 1
          %s424 = scalar_lea.sflag [#allocation5], %s423
          %s425 = sand.u32 %s149, 1
          %s426 = smul.addr %s425, 4
          %s427 = scalar_lea.vmem [#allocation9], %s426
          %429 = dma.done %s424, 64
        $region68: #{tpu_custom_call.1} parent=63 // pred_fallthru
          _
      $region64: #{tpu_custom_call.1} parent=5 // pred_fallthru
        _
    $region6: #{tpu_custom_call.1} parent=1 // loop_footer
      %s21 = sadd.s32 1, %s17
    $region7: #{tpu_custom_call.1} parent=1 // loop_footer_branch
      %16 = sbr.rel target = $region3
    $region8: #{tpu_custom_call.1} parent=1 // loop_exit
      _
    %430 = vsyncpa [#allocation4], 1
    %s431 = scalar_lea.sflag [#allocation4], 1
    %432 = vsyncpa %s431, 1
    %433 = vsyncpa [#allocation7], 1
    %s434 = scalar_lea.sflag [#allocation7], 1
    %435 = vsyncpa %s434, 1
    %436 = vsyncpa [#allocation5], 1
    %s437 = scalar_lea.sflag [#allocation5], 1
    %438 = vsyncpa %s437, 1

</llo_original>
